<compile_context>
chip_gen: v7x
topology: tpu7x:2x2x1
jax: 0.10.0
libtpu: 0.0.40
codegen_flags: <defaults>
</compile_context>

<pallas_src>
import jax
import jax.numpy as jnp
from jax.experimental import pallas as pl
from jax.experimental.pallas import tpu as pltpu

EPS = 1e-3


def _bn_kernel(x_ref, gamma_ref, beta_ref, o_ref):
    # x_ref: (N, TC, HW); gamma_ref / beta_ref: (1, TC, 1); o_ref: (N, TC, HW)
    n = x_ref.shape[0]
    hw = x_ref.shape[2]
    inv_r = 1.0 / (n * hw)

    # Single statistics pass: accumulate sum and sum-of-squares.  The (static,
    # small) batch axis is unrolled so every op stays 2-D (sublane = channels,
    # lane = spatial) -> simple lane reductions and a tiny live-vreg footprint.
    s = jnp.zeros((x_ref.shape[1], 1), jnp.float32)
    sq = jnp.zeros((x_ref.shape[1], 1), jnp.float32)
    for b in range(n):
        xb = x_ref[b].astype(jnp.float32)                     # (TC, HW)
        s = s + jnp.sum(xb, axis=-1, keepdims=True)
        sq = sq + jnp.sum(xb * xb, axis=-1, keepdims=True)

    mean = s * inv_r                                          # (TC, 1)
    var = sq * inv_r - mean * mean                            # biased variance
    inv_std = jax.lax.rsqrt(var + EPS)

    # Fold the affine into per-channel scale/shift: y = x * scale + shift.
    scale = inv_std * gamma_ref[0]                            # (TC, 1)
    shift = beta_ref[0] - mean * scale                        # (TC, 1)

    # Normalize pass (re-reads the tile from VMEM instead of keeping the whole
    # slab live across both phases).
    for b in range(n):
        xb = x_ref[b].astype(jnp.float32)
        o_ref[b] = (xb * scale + shift).astype(o_ref.dtype)


def _pick_channel_tile(c):
    # Largest divisor of C that is a multiple of 8 and <= 256: keeps the tile
    # comfortably inside VMEM/vregs on v5e/v6e/v7x while still giving a
    # multi-step "parallel" grid for megacore sharding.
    for tc in (256, 240, 224, 192, 160, 128, 120, 96, 64, 48, 32, 24, 16, 8):
        if c % tc == 0:
            return tc
    return c


def batchnorm2d(x_nchw, gamma, beta):
    """BatchNorm2d forward using batch statistics. x_nchw: (N, C, H, W)."""
    n, c, h, w = x_nchw.shape
    hw = h * w
    # NCHW -> (N, C, H*W): merging contiguous trailing dims is a free reshape
    # (no standalone XLA transpose kernels on either side of the call).
    x3d = x_nchw.reshape(n, c, hw)
    g3d = gamma.reshape(1, c, 1).astype(jnp.float32)
    b3d = beta.reshape(1, c, 1).astype(jnp.float32)

    tc = _pick_channel_tile(c)

    out3d = pl.pallas_call(
        _bn_kernel,
        out_shape=jax.ShapeDtypeStruct((n, c, hw), x_nchw.dtype),
        grid=(c // tc,),
        in_specs=[
            pl.BlockSpec((n, tc, hw), lambda i: (0, i, 0)),
            pl.BlockSpec((1, tc, 1), lambda i: (0, i, 0)),
            pl.BlockSpec((1, tc, 1), lambda i: (0, i, 0)),
        ],
        out_specs=pl.BlockSpec((n, tc, hw), lambda i: (0, i, 0)),
        compiler_params=pltpu.CompilerParams(
            dimension_semantics=("parallel",)),
    )(x3d, g3d, b3d)

    return out3d.reshape(n, c, h, w)


def _reference(x_nchw, gamma, beta):
    x = x_nchw.astype(jnp.float32)
    mean = jnp.mean(x, axis=(0, 2, 3), keepdims=True)
    var = jnp.mean((x - mean) ** 2, axis=(0, 2, 3), keepdims=True)
    g = gamma.reshape(1, -1, 1, 1)
    b = beta.reshape(1, -1, 1, 1)
    return ((x - mean) * jax.lax.rsqrt(var + EPS) * g + b).astype(x_nchw.dtype)


if __name__ == "__main__":
    key = jax.random.PRNGKey(0)
    kx, kg, kb = jax.random.split(key, 3)

    # Same shape as the traced module: (1, 960, 7, 7).  C must stay 960.
    N, C, H, W = 1, 960, 7, 7
    x = jax.random.normal(kx, (N, C, H, W), dtype=jnp.float32)
    # PyTorch default affine init is gamma=1, beta=0; use random values so the
    # affine path is actually exercised.
    gamma = 1.0 + 0.1 * jax.random.normal(kg, (C,), dtype=jnp.float32)
    beta = 0.1 * jax.random.normal(kb, (C,), dtype=jnp.float32)

    # TODO(synk): running_mean/running_var buffer updates (momentum=0.01) are
    # not computed; only the forward activation x153 is produced, matching
    # M.forward's return value.
    out = batchnorm2d(x, gamma, beta)
    out = jax.block_until_ready(out)

    ref = _reference(x, gamma, beta)
    assert out.shape == (N, C, H, W)
    assert jnp.allclose(out, ref, atol=1e-4, rtol=1e-4), "mismatch vs reference"

    print("KERNEL_OK")
</pallas_src>

<mosaic_0001>
module attributes {stable_mosaic.version = 11 : i64} {
  func.func @_bn_kernel(%arg0: i32, %arg1: memref<1x240x49xf32, #tpu.memory_space<vmem>>, %arg2: memref<1x240x1xf32, #tpu.memory_space<vmem>>, %arg3: memref<1x240x1xf32, #tpu.memory_space<vmem>>, %arg4: memref<1x240x49xf32, #tpu.memory_space<vmem>>) attributes {dimension_semantics = [#tpu.dimension_semantics<parallel>], iteration_bounds = array<i64: 4>, scalar_prefetch = 0 : i64, scratch_operands = 0 : i64, tpu.core_type = #tpu.core_type<tc>, window_params = [{transform_indices = @transform_0, window_bounds = array<i64: 1, 240, 49>}, {transform_indices = @transform_1, window_bounds = array<i64: 1, 240, 1>}, {transform_indices = @transform_2, window_bounds = array<i64: 1, 240, 1>}, {transform_indices = @transform_3, window_bounds = array<i64: 1, 240, 49>}]} {
    %cst = arith.constant 0.000000e+00 : f32
    %0 = vector.broadcast %cst : f32 to vector<240x1xf32>
    %cst_0 = arith.constant 0.000000e+00 : f32
    %1 = vector.broadcast %cst_0 : f32 to vector<240x1xf32>
    %c0 = arith.constant 0 : index
    %c0_1 = arith.constant 0 : index
    %c0_2 = arith.constant 0 : index
    %2 = vector.load %arg1[%c0, %c0_1, %c0_2] : memref<1x240x49xf32, #tpu.memory_space<vmem>>, vector<1x240x49xf32>
    %3 = vector.shape_cast %2 : vector<1x240x49xf32> to vector<240x49xf32>
    %cst_3 = arith.constant dense<0.000000e+00> : vector<240xf32>
    %4 = vector.multi_reduction <add>, %3, %cst_3 [1] : vector<240x49xf32> to vector<240xf32>
    %5 = vector.shape_cast %4 : vector<240xf32> to vector<240x1xf32>
    %6 = arith.addf %0, %5 : vector<240x1xf32>
    %7 = arith.mulf %3, %3 : vector<240x49xf32>
    %cst_4 = arith.constant dense<0.000000e+00> : vector<240xf32>
    %8 = vector.multi_reduction <add>, %7, %cst_4 [1] : vector<240x49xf32> to vector<240xf32>
    %9 = vector.shape_cast %8 : vector<240xf32> to vector<240x1xf32>
    %10 = arith.addf %1, %9 : vector<240x1xf32>
    %cst_5 = arith.constant 0.0204081628 : f32
    %11 = vector.broadcast %cst_5 : f32 to vector<240x1xf32>
    %12 = arith.mulf %6, %11 : vector<240x1xf32>
    %cst_6 = arith.constant 0.0204081628 : f32
    %13 = vector.broadcast %cst_6 : f32 to vector<240x1xf32>
    %14 = arith.mulf %10, %13 : vector<240x1xf32>
    %15 = arith.mulf %12, %12 : vector<240x1xf32>
    %16 = arith.subf %14, %15 : vector<240x1xf32>
    %cst_7 = arith.constant 1.000000e-03 : f32
    %17 = vector.broadcast %cst_7 : f32 to vector<240x1xf32>
    %18 = arith.addf %16, %17 : vector<240x1xf32>
    %19 = math.rsqrt %18 : vector<240x1xf32>
    %c0_8 = arith.constant 0 : index
    %c0_9 = arith.constant 0 : index
    %c0_10 = arith.constant 0 : index
    %20 = vector.load %arg2[%c0_8, %c0_9, %c0_10] : memref<1x240x1xf32, #tpu.memory_space<vmem>>, vector<1x240x1xf32>
    %21 = vector.shape_cast %20 : vector<1x240x1xf32> to vector<240x1xf32>
    %22 = arith.mulf %19, %21 : vector<240x1xf32>
    %c0_11 = arith.constant 0 : index
    %c0_12 = arith.constant 0 : index
    %c0_13 = arith.constant 0 : index
    %23 = vector.load %arg3[%c0_11, %c0_12, %c0_13] : memref<1x240x1xf32, #tpu.memory_space<vmem>>, vector<1x240x1xf32>
    %24 = vector.shape_cast %23 : vector<1x240x1xf32> to vector<240x1xf32>
    %25 = arith.mulf %12, %22 : vector<240x1xf32>
    %26 = arith.subf %24, %25 : vector<240x1xf32>
    %c0_14 = arith.constant 0 : index
    %c0_15 = arith.constant 0 : index
    %c0_16 = arith.constant 0 : index
    %27 = vector.load %arg1[%c0_14, %c0_15, %c0_16] : memref<1x240x49xf32, #tpu.memory_space<vmem>>, vector<1x240x49xf32>
    %28 = vector.shape_cast %27 : vector<1x240x49xf32> to vector<240x49xf32>
    %29 = vector.broadcast %22 : vector<240x1xf32> to vector<240x49xf32>
    %30 = arith.mulf %28, %29 : vector<240x49xf32>
    %31 = vector.broadcast %26 : vector<240x1xf32> to vector<240x49xf32>
    %32 = arith.addf %30, %31 : vector<240x49xf32>
    %c0_17 = arith.constant 0 : index
    %c0_18 = arith.constant 0 : index
    %c0_19 = arith.constant 0 : index
    %33 = vector.load %arg4[%c0_17, %c0_18, %c0_19] : memref<1x240x49xf32, #tpu.memory_space<vmem>>, vector<1x240x49xf32>
    %34 = vector.shape_cast %33 : vector<1x240x49xf32> to vector<240x49xf32>
    %35 = vector.shape_cast %32 : vector<240x49xf32> to vector<1x240x49xf32>
    tpu.vector_store %arg4[%c0_17, %c0_18, %c0_19], %35 {strides = array<i32>} : memref<1x240x49xf32, #tpu.memory_space<vmem>>, vector<1x240x49xf32>,
    return
  }
  func.func @transform_0(%arg0: i32) -> (i32, i32, i32) {
    %c0_i32 = arith.constant 0 : i32
    %c0_i32_0 = arith.constant 0 : i32
    %c0_i32_1 = arith.constant 0 : i32
    return %c0_i32, %arg0, %c0_i32_0 : i32, i32, i32
  }
  func.func @transform_1(%arg0: i32) -> (i32, i32, i32) {
    %c0_i32 = arith.constant 0 : i32
    %c0_i32_0 = arith.constant 0 : i32
    %c0_i32_1 = arith.constant 0 : i32
    return %c0_i32, %arg0, %c0_i32_0 : i32, i32, i32
  }
  func.func @transform_2(%arg0: i32) -> (i32, i32, i32) {
    %c0_i32 = arith.constant 0 : i32
    %c0_i32_0 = arith.constant 0 : i32
    %c0_i32_1 = arith.constant 0 : i32
    return %c0_i32, %arg0, %c0_i32_0 : i32, i32, i32
  }
  func.func @transform_3(%arg0: i32) -> (i32, i32, i32) {
    %c0_i32 = arith.constant 0 : i32
    %c0_i32_0 = arith.constant 0 : i32
    %c0_i32_1 = arith.constant 0 : i32
    return %c0_i32, %arg0, %c0_i32_0 : i32, i32, i32
  }
}

</mosaic_0001>

<llo_original>
// kernel: tpu_custom_call.1
$region0: #{tpu_custom_call.1}
  #allocation0 [shape = 'u32[]', space=smem, size = 0x4, offset = 0x4, fixed_abs, tag = 'smem constant byte address 0x4 - core index']
  #allocation1 [shape = 'u32[144,128]{1,0:T(1,128)}', space=vmem, size = 0x12000, scoped, tag = 'internal scratch']
  %s0 = inlined_call_operand.vmem [shape: f32[1,960,49], index: 0, kind: input, shape index: {}]
  %s1 = inlined_call_operand.vmem [shape: f32[1,960,1], index: 1, kind: input, shape index: {}]
  %s2 = inlined_call_operand.vmem [shape: f32[1,960,1], index: 2, kind: input, shape index: {}]
  %s3 = inlined_call_operand.vmem [shape: f32[1,960,49], index: 3, kind: output, shape index: {}]
  %s4 = sld [smem:[#allocation0]]
  $region45: #{tpu_custom_call.1} parent=0
    _
  %s6 = ssub.s32 1, %s4
  %s7 = scalar_select 0, %s6, %s4
  loop: start=0, step=1, limit=6
  $region2: #{tpu_custom_call.1} parent=0 // loop_pre_header
    _
  $region3: #{tpu_custom_call.1} parent=0 // loop_header
    %s9 = sphi 0, %s13
    %p10 = scmp.ge.s32.totalorder %s9, 6
    %s19 = sphi 0, %s21
    %s22 = sphi 0, %s19
    %s23 = sphi 0, %s22
    %s39 = sphi 0, %s23
    %s45 = sphi 0, %s47
    %s48 = sphi 0, %s45
    %s49 = sphi 0, %s48
    %s65 = sphi 0, %s49
    %s71 = sphi 0, %s73
    %s74 = sphi 0, %s71
    %s75 = sphi 0, %s74
    %s91 = sphi 0, %s75
    %s97 = sphi 0, %s99
    %s100 = sphi 0, %s97
    %s101 = sphi 0, %s100
    %s117 = sphi 0, %s101
  $region4: #{tpu_custom_call.1} parent=0 // loop_header_branch
    %12 = sbr.rel (%p10) target = $region8
  $region5: #{tpu_custom_call.1} parent=0 // loop_body
    %s14 = ssub.s32 %s9, 1
    %s15 = ssub.s32 %s9, 2
    %s16 = sadd.s32 %s9, 1
    %s17 = ssub.s32 %s9, %s16
    %p18 = scmp.eq.s32.totalorder %s17, 0
    %s20 = sadd.s32 %s19, 1
    %s21 = scalar_select %p18, %s19, %s20
    %p24 = pneg %p18
    %p25 = scmp.eq.s32.totalorder %s9, 3
    %p26 = por %p24, %p25
    %p27 = scmp.ne.s32.totalorder %s19, %s22
    %p28 = scmp.eq.s32.totalorder %s9, 0
    %p29 = por %p27, %p28
    %p30 = scmp.ne.s32.totalorder %s19, %s22
    %p31 = scmp.eq.s32.totalorder %s14, 3
    %p32 = por %p30, %p31
    %p33 = scmp.ne.s32.totalorder %s22, %s23
    %p34 = scmp.eq.s32.totalorder %s14, 0
    %p35 = por %p33, %p34
    %p36 = scmp.ne.s32.totalorder %s22, %s23
    %p37 = scmp.eq.s32.totalorder %s15, 3
    %p38 = por %p36, %p37
    %p40 = scmp.ne.s32.totalorder %s23, %s39
    %p41 = scmp.eq.s32.totalorder %s15, 0
    %p42 = por %p40, %p41
    %s43 = ssub.s32 %s9, %s16
    %p44 = scmp.eq.s32.totalorder %s43, 0
    %s46 = sadd.s32 %s45, 1
    %s47 = scalar_select %p44, %s45, %s46
    %p50 = pneg %p44
    %p51 = scmp.eq.s32.totalorder %s9, 3
    %p52 = por %p50, %p51
    %p53 = scmp.ne.s32.totalorder %s45, %s48
    %p54 = scmp.eq.s32.totalorder %s9, 0
    %p55 = por %p53, %p54
    %p56 = scmp.ne.s32.totalorder %s45, %s48
    %p57 = scmp.eq.s32.totalorder %s14, 3
    %p58 = por %p56, %p57
    %p59 = scmp.ne.s32.totalorder %s48, %s49
    %p60 = scmp.eq.s32.totalorder %s14, 0
    %p61 = por %p59, %p60
    %p62 = scmp.ne.s32.totalorder %s48, %s49
    %p63 = scmp.eq.s32.totalorder %s15, 3
    %p64 = por %p62, %p63
    %p66 = scmp.ne.s32.totalorder %s49, %s65
    %p67 = scmp.eq.s32.totalorder %s15, 0
    %p68 = por %p66, %p67
    %s69 = ssub.s32 %s9, %s16
    %p70 = scmp.eq.s32.totalorder %s69, 0
    %s72 = sadd.s32 %s71, 1
    %s73 = scalar_select %p70, %s71, %s72
    %p76 = pneg %p70
    %p77 = scmp.eq.s32.totalorder %s9, 3
    %p78 = por %p76, %p77
    %p79 = scmp.ne.s32.totalorder %s71, %s74
    %p80 = scmp.eq.s32.totalorder %s9, 0
    %p81 = por %p79, %p80
    %p82 = scmp.ne.s32.totalorder %s71, %s74
    %p83 = scmp.eq.s32.totalorder %s14, 3
    %p84 = por %p82, %p83
    %p85 = scmp.ne.s32.totalorder %s74, %s75
    %p86 = scmp.eq.s32.totalorder %s14, 0
    %p87 = por %p85, %p86
    %p88 = scmp.ne.s32.totalorder %s74, %s75
    %p89 = scmp.eq.s32.totalorder %s15, 3
    %p90 = por %p88, %p89
    %p92 = scmp.ne.s32.totalorder %s75, %s91
    %p93 = scmp.eq.s32.totalorder %s15, 0
    %p94 = por %p92, %p93
    %s95 = ssub.s32 %s9, %s16
    %p96 = scmp.eq.s32.totalorder %s95, 0
    %s98 = sadd.s32 %s97, 1
    %s99 = scalar_select %p96, %s97, %s98
    %p102 = pneg %p96
    %p103 = scmp.eq.s32.totalorder %s9, 3
    %p104 = por %p102, %p103
    %p105 = scmp.ne.s32.totalorder %s97, %s100
    %p106 = scmp.eq.s32.totalorder %s9, 0
    %p107 = por %p105, %p106
    %p108 = scmp.ne.s32.totalorder %s97, %s100
    %p109 = scmp.eq.s32.totalorder %s14, 3
    %p110 = por %p108, %p109
    %p111 = scmp.ne.s32.totalorder %s100, %s101
    %p112 = scmp.eq.s32.totalorder %s14, 0
    %p113 = por %p111, %p112
    %p114 = scmp.ne.s32.totalorder %s100, %s101
    %p115 = scmp.eq.s32.totalorder %s15, 3
    %p116 = por %p114, %p115
    %p118 = scmp.ne.s32.totalorder %s101, %s117
    %p119 = scmp.eq.s32.totalorder %s15, 0
    %p120 = por %p118, %p119
    %p121 = scmp.le.s32.totalorder 1, %s9
    %p122 = scmp.lt.s32.totalorder %s9, 5
    %p123 = pnand %p121, %p122
    %p124 = pneg %p123
    // Predicated region
    $region9: #{tpu_custom_call.1} parent=5 // pred_check
      _
    $region10: #{tpu_custom_call.1} parent=5 // pred_check_branch
      %126 = sbr.rel (%p123) target = $region12
    $region11: #{tpu_custom_call.1} parent=5 // pred_region
      %s127 = ssub.s32 %s9, 1
    $region12: #{tpu_custom_call.1} parent=5 // pred_fallthru
      _
    %p128 = scmp.lt.s32.totalorder %s9, 4
    // Predicated region
    $region13: #{tpu_custom_call.1} parent=5 // pred_check
      %p129 = pneg %p128
    $region14: #{tpu_custom_call.1} parent=5 // pred_check_branch
      %131 = sbr.rel (%p129) target = $region16
    $region15: #{tpu_custom_call.1} parent=5 // pred_region
      // Predicated region
      $region17: #{tpu_custom_call.1} parent=15 // pred_check
        %p132 = pneg %p29
      $region18: #{tpu_custom_call.1} parent=15 // pred_check_branch
        %134 = sbr.rel (%p132) target = $region20
      $region19: #{tpu_custom_call.1} parent=15 // pred_region
        %s135 = smul.u32 30, %s9
        %p136 = scmp.lt.s32.totalorder %s135, 119
        %s137 = scalar_select %p136, %s135, 119
        %s138 = smul.addr %s137, 8
        %s139 = scalar_lea.vmem %s0, %s138
        %s140 = smul.u32 30, %s9
      $region20: #{tpu_custom_call.1} parent=15 // pred_fallthru
        _
      // Predicated region
      $region21: #{tpu_custom_call.1} parent=15 // pred_check
        %p141 = pneg %p55
      $region22: #{tpu_custom_call.1} parent=15 // pred_check_branch
        %143 = sbr.rel (%p141) target = $region24
      $region23: #{tpu_custom_call.1} parent=15 // pred_region
        %s144 = smul.u32 30, %s9
        %p145 = scmp.lt.s32.totalorder %s144, 119
        %s146 = scalar_select %p145, %s144, 119
        %s147 = smul.addr %s146, 8
        %s148 = scalar_lea.vmem %s1, %s147
        %s149 = smul.u32 30, %s9
      $region24: #{tpu_custom_call.1} parent=15 // pred_fallthru
        _
      // Predicated region
      $region25: #{tpu_custom_call.1} parent=15 // pred_check
        %p150 = pneg %p81
      $region26: #{tpu_custom_call.1} parent=15 // pred_check_branch
        %152 = sbr.rel (%p150) target = $region28
      $region27: #{tpu_custom_call.1} parent=15 // pred_region
        %s153 = smul.u32 30, %s9
        %p154 = scmp.lt.s32.totalorder %s153, 119
        %s155 = scalar_select %p154, %s153, 119
        %s156 = smul.addr %s155, 8
        %s157 = scalar_lea.vmem %s2, %s156
        %s158 = smul.u32 30, %s9
      $region28: #{tpu_custom_call.1} parent=15 // pred_fallthru
        _
    $region16: #{tpu_custom_call.1} parent=5 // pred_fallthru
      _
    %p159 = scmp.le.s32.totalorder 1, %s9
    %p160 = scmp.lt.s32.totalorder %s9, 5
    %p161 = pnand %p159, %p160
    %p162 = pneg %p161
    // Predicated region
    $region29: #{tpu_custom_call.1} parent=5 // pred_check
      _
    $region30: #{tpu_custom_call.1} parent=5 // pred_check_branch
      %164 = sbr.rel (%p161) target = $region32
    $region31: #{tpu_custom_call.1} parent=5 // pred_region
      %s165 = ssub.s32 %s9, 1
      %s166 = smul.u32 30, %s14
      %p167 = scmp.lt.s32.totalorder %s166, 119
      %s168 = scalar_select %p167, %s166, 119
      %s169 = smul.addr %s168, 8
      %s170 = scalar_lea.vmem %s0, %s169
      %p171 = pneg %p35
      %p172 = pneg %p32
      %s173 = smul.u32 30, %s14
      %p174 = scmp.lt.s32.totalorder %s173, 119
      %s175 = scalar_select %p174, %s173, 119
      %s176 = smul.addr %s175, 8
      %s177 = scalar_lea.vmem %s1, %s176
      %p178 = pneg %p61
      %p179 = pneg %p58
      %s180 = smul.u32 30, %s14
      %p181 = scmp.lt.s32.totalorder %s180, 119
      %s182 = scalar_select %p181, %s180, 119
      %s183 = smul.addr %s182, 8
      %s184 = scalar_lea.vmem %s2, %s183
      %p185 = pneg %p87
      %p186 = pneg %p84
      %p187 = pneg %p113
      %p188 = pneg %p110
      %s189 = smul.u32 30, %s14
      %p190 = scmp.lt.s32.totalorder %s189, 119
      %s191 = scalar_select %p190, %s189, 119
      %s192 = smul.addr %s191, 8
      %s193 = scalar_lea.vmem %s3, %s192
      %s194 = smul.u32 30, %s14
      %p195 = scmp.lt.s32.totalorder %s194, 119
      %s196 = scalar_select %p195, %s194, 119
      %s197 = smul.addr %s196, 8
      %s198 = scalar_lea.vmem %s0, %s197
      %s199 = smul.u32 30, %s14
      %s200 = smul.u32 30, %s14
      %p201 = scmp.lt.s32.totalorder %s200, 119
      %s202 = scalar_select %p201, %s200, 119
      %s203 = smul.addr %s202, 8
      %s204 = scalar_lea.vmem %s1, %s203
      %s205 = smul.u32 30, %s14
      %s206 = smul.u32 30, %s14
      %p207 = scmp.lt.s32.totalorder %s206, 119
      %s208 = scalar_select %p207, %s206, 119
      %s209 = smul.addr %s208, 8
      %s210 = scalar_lea.vmem %s2, %s209
      %s211 = smul.u32 30, %s14
      %s212 = smul.u32 30, %s14
      %p213 = scmp.lt.s32.totalorder %s212, 119
      %s214 = scalar_select %p213, %s212, 119
      %s215 = smul.addr %s214, 8
      %s216 = scalar_lea.vmem %s3, %s215
      %s217 = smul.u32 30, %s14
      %v218 = vld [vmem:[%s198] sm:$0xff]
      %v219 = vld [vmem:[%s198 + $0x8] sm:$0xff]
      %v220 = vld [vmem:[%s198 + $0x10] sm:$0xff]
      %v221 = vld [vmem:[%s198 + $0x18] sm:$0xff]
      %v222 = vld [vmem:[%s198 + $0x20] sm:$0xff]
      %v223 = vld [vmem:[%s198 + $0x28] sm:$0xff]
      %v224 = vld [vmem:[%s198 + $0x30] sm:$0xff]
      %v225 = vld [vmem:[%s198 + $0x38] sm:$0xff]
      %v226 = vld [vmem:[%s198 + $0x40] sm:$0xff]
      %v227 = vld [vmem:[%s198 + $0x48] sm:$0xff]
      %v228 = vld [vmem:[%s198 + $0x50] sm:$0xff]
      %v229 = vld [vmem:[%s198 + $0x58] sm:$0xff]
      %v230 = vld [vmem:[%s198 + $0x60] sm:$0xff]
      %v231 = vld [vmem:[%s198 + $0x68] sm:$0xff]
      %v232 = vld [vmem:[%s198 + $0x70] sm:$0xff]
      %v233 = vld [vmem:[%s198 + $0x78] sm:$0xff]
      %v234 = vld [vmem:[%s198 + $0x80] sm:$0xff]
      %v235 = vld [vmem:[%s198 + $0x88] sm:$0xff]
      %v236 = vld [vmem:[%s198 + $0x90] sm:$0xff]
      %v237 = vld [vmem:[%s198 + $0x98] sm:$0xff]
      %v238 = vld [vmem:[%s198 + $0xa0] sm:$0xff]
      %v239 = vld [vmem:[%s198 + $0xa8] sm:$0xff]
      %v240 = vld [vmem:[%s198 + $0xb0] sm:$0xff]
      %v241 = vld [vmem:[%s198 + $0xb8] sm:$0xff]
      %v242 = vld [vmem:[%s198 + $0xc0] sm:$0xff]
      %v243 = vld [vmem:[%s198 + $0xc8] sm:$0xff]
      %v244 = vld [vmem:[%s198 + $0xd0] sm:$0xff]
      %v245 = vld [vmem:[%s198 + $0xd8] sm:$0xff]
      %v246 = vld [vmem:[%s198 + $0xe0] sm:$0xff]
      %v247 = vld [vmem:[%s198 + $0xe8] sm:$0xff]
      %vm248 = vcmask 400384
      %v249 = vsel %vm248, %v218, 0.0
      %250 = vadd.xlane.f32.xlu0 %v249
      %v251 = vpop.xlane.xlu0 %250
      %v252 = vsel %vm248, %v219, 0.0
      %253 = vadd.xlane.f32.xlu0 %v252
      %v254 = vpop.xlane.xlu0 %253
      %v255 = vsel %vm248, %v220, 0.0
      %256 = vadd.xlane.f32.xlu0 %v255
      %v257 = vpop.xlane.xlu0 %256
      %v258 = vsel %vm248, %v221, 0.0
      %259 = vadd.xlane.f32.xlu0 %v258
      %v260 = vpop.xlane.xlu0 %259
      %v261 = vsel %vm248, %v222, 0.0
      %262 = vadd.xlane.f32.xlu0 %v261
      %v263 = vpop.xlane.xlu0 %262
      %v264 = vsel %vm248, %v223, 0.0
      %265 = vadd.xlane.f32.xlu0 %v264
      %v266 = vpop.xlane.xlu0 %265
      %v267 = vsel %vm248, %v224, 0.0
      %268 = vadd.xlane.f32.xlu0 %v267
      %v269 = vpop.xlane.xlu0 %268
      %v270 = vsel %vm248, %v225, 0.0
      %271 = vadd.xlane.f32.xlu0 %v270
      %v272 = vpop.xlane.xlu0 %271
      %v273 = vsel %vm248, %v226, 0.0
      %274 = vadd.xlane.f32.xlu0 %v273
      %v275 = vpop.xlane.xlu0 %274
      %v276 = vsel %vm248, %v227, 0.0
      %277 = vadd.xlane.f32.xlu0 %v276
      %v278 = vpop.xlane.xlu0 %277
      %v279 = vsel %vm248, %v228, 0.0
      %280 = vadd.xlane.f32.xlu0 %v279
      %v281 = vpop.xlane.xlu0 %280
      %v282 = vsel %vm248, %v229, 0.0
      %283 = vadd.xlane.f32.xlu0 %v282
      %v284 = vpop.xlane.xlu0 %283
      %v285 = vsel %vm248, %v230, 0.0
      %286 = vadd.xlane.f32.xlu0 %v285
      %v287 = vpop.xlane.xlu0 %286
      %v288 = vsel %vm248, %v231, 0.0
      %289 = vadd.xlane.f32.xlu0 %v288
      %v290 = vpop.xlane.xlu0 %289
      %v291 = vsel %vm248, %v232, 0.0
      %292 = vadd.xlane.f32.xlu0 %v291
      %v293 = vpop.xlane.xlu0 %292
      %v294 = vsel %vm248, %v233, 0.0
      %295 = vadd.xlane.f32.xlu0 %v294
      %v296 = vpop.xlane.xlu0 %295
      %v297 = vsel %vm248, %v234, 0.0
      %298 = vadd.xlane.f32.xlu0 %v297
      %v299 = vpop.xlane.xlu0 %298
      %v300 = vsel %vm248, %v235, 0.0
      %301 = vadd.xlane.f32.xlu0 %v300
      %v302 = vpop.xlane.xlu0 %301
      %v303 = vsel %vm248, %v236, 0.0
      %304 = vadd.xlane.f32.xlu0 %v303
      %v305 = vpop.xlane.xlu0 %304
      %v306 = vsel %vm248, %v237, 0.0
      %307 = vadd.xlane.f32.xlu0 %v306
      %v308 = vpop.xlane.xlu0 %307
      %v309 = vsel %vm248, %v238, 0.0
      %310 = vadd.xlane.f32.xlu0 %v309
      %v311 = vpop.xlane.xlu0 %310
      %v312 = vsel %vm248, %v239, 0.0
      %313 = vadd.xlane.f32.xlu0 %v312
      %v314 = vpop.xlane.xlu0 %313
      %v315 = vsel %vm248, %v240, 0.0
      %316 = vadd.xlane.f32.xlu0 %v315
      %v317 = vpop.xlane.xlu0 %316
      %v318 = vsel %vm248, %v241, 0.0
      %319 = vadd.xlane.f32.xlu0 %v318
      %v320 = vpop.xlane.xlu0 %319
      %v321 = vsel %vm248, %v242, 0.0
      %322 = vadd.xlane.f32.xlu0 %v321
      %v323 = vpop.xlane.xlu0 %322
      %v324 = vsel %vm248, %v243, 0.0
      %325 = vadd.xlane.f32.xlu0 %v324
      %v326 = vpop.xlane.xlu0 %325
      %v327 = vsel %vm248, %v244, 0.0
      %328 = vadd.xlane.f32.xlu0 %v327
      %v329 = vpop.xlane.xlu0 %328
      %v330 = vsel %vm248, %v245, 0.0
      %331 = vadd.xlane.f32.xlu0 %v330
      %v332 = vpop.xlane.xlu0 %331
      %v333 = vsel %vm248, %v246, 0.0
      %334 = vadd.xlane.f32.xlu0 %v333
      %v335 = vpop.xlane.xlu0 %334
      %v336 = vsel %vm248, %v247, 0.0
      %337 = vadd.xlane.f32.xlu0 %v336
      %v338 = vpop.xlane.xlu0 %337
      %v339 = vadd.f32 %v251, 0.0
      %v340 = vadd.f32 %v254, 0.0
      %v341 = vadd.f32 %v257, 0.0
      %v342 = vadd.f32 %v260, 0.0
      %v343 = vadd.f32 %v263, 0.0
      %v344 = vadd.f32 %v266, 0.0
      %v345 = vadd.f32 %v269, 0.0
      %v346 = vadd.f32 %v272, 0.0
      %v347 = vadd.f32 %v275, 0.0
      %v348 = vadd.f32 %v278, 0.0
      %v349 = vadd.f32 %v281, 0.0
      %v350 = vadd.f32 %v284, 0.0
      %v351 = vadd.f32 %v287, 0.0
      %v352 = vadd.f32 %v290, 0.0
      %v353 = vadd.f32 %v293, 0.0
      %v354 = vadd.f32 %v296, 0.0
      %v355 = vadd.f32 %v299, 0.0
      %v356 = vadd.f32 %v302, 0.0
      %v357 = vadd.f32 %v305, 0.0
      %v358 = vadd.f32 %v308, 0.0
      %v359 = vadd.f32 %v311, 0.0
      %v360 = vadd.f32 %v314, 0.0
      %v361 = vadd.f32 %v317, 0.0
      %v362 = vadd.f32 %v320, 0.0
      %v363 = vadd.f32 %v323, 0.0
      %v364 = vadd.f32 %v326, 0.0
      %v365 = vadd.f32 %v329, 0.0
      %v366 = vadd.f32 %v332, 0.0
      %v367 = vadd.f32 %v335, 0.0
      %v368 = vadd.f32 %v338, 0.0
      %v369 = vmul.f32 %v218, %v218
      %v370 = vmul.f32 %v219, %v219
      %v371 = vmul.f32 %v220, %v220
      %v372 = vmul.f32 %v221, %v221
      %v373 = vmul.f32 %v222, %v222
      %v374 = vmul.f32 %v223, %v223
      %v375 = vmul.f32 %v224, %v224
      %v376 = vmul.f32 %v225, %v225
      %v377 = vmul.f32 %v226, %v226
      %v378 = vmul.f32 %v227, %v227
      %v379 = vmul.f32 %v228, %v228
      %v380 = vmul.f32 %v229, %v229
      %v381 = vmul.f32 %v230, %v230
      %v382 = vmul.f32 %v231, %v231
      %v383 = vmul.f32 %v232, %v232
      %v384 = vmul.f32 %v233, %v233
      %v385 = vmul.f32 %v234, %v234
      %v386 = vmul.f32 %v235, %v235
      %v387 = vmul.f32 %v236, %v236
      %v388 = vmul.f32 %v237, %v237
      %v389 = vmul.f32 %v238, %v238
      %v390 = vmul.f32 %v239, %v239
      %v391 = vmul.f32 %v240, %v240
      %v392 = vmul.f32 %v241, %v241
      %v393 = vmul.f32 %v242, %v242
      %v394 = vmul.f32 %v243, %v243
      %v395 = vmul.f32 %v244, %v244
      %v396 = vmul.f32 %v245, %v245
      %v397 = vmul.f32 %v246, %v246
      %v398 = vmul.f32 %v247, %v247
      %v399 = vsel %vm248, %v369, 0.0
      %400 = vadd.xlane.f32.xlu0 %v399
      %v401 = vpop.xlane.xlu0 %400
      %v402 = vsel %vm248, %v370, 0.0
      %403 = vadd.xlane.f32.xlu0 %v402
      %v404 = vpop.xlane.xlu0 %403
      %v405 = vsel %vm248, %v371, 0.0
      %406 = vadd.xlane.f32.xlu0 %v405
      %v407 = vpop.xlane.xlu0 %406
      %v408 = vsel %vm248, %v372, 0.0
      %409 = vadd.xlane.f32.xlu0 %v408
      %v410 = vpop.xlane.xlu0 %409
      %v411 = vsel %vm248, %v373, 0.0
      %412 = vadd.xlane.f32.xlu0 %v411
      %v413 = vpop.xlane.xlu0 %412
      %v414 = vsel %vm248, %v374, 0.0
      %415 = vadd.xlane.f32.xlu0 %v414
      %v416 = vpop.xlane.xlu0 %415
      %v417 = vsel %vm248, %v375, 0.0
      %418 = vadd.xlane.f32.xlu0 %v417
      %v419 = vpop.xlane.xlu0 %418
      %v420 = vsel %vm248, %v376, 0.0
      %421 = vadd.xlane.f32.xlu0 %v420
      %v422 = vpop.xlane.xlu0 %421
      %v423 = vsel %vm248, %v377, 0.0
      %424 = vadd.xlane.f32.xlu0 %v423
      %v425 = vpop.xlane.xlu0 %424
      %v426 = vsel %vm248, %v378, 0.0
      %427 = vadd.xlane.f32.xlu0 %v426
      %v428 = vpop.xlane.xlu0 %427
      %v429 = vsel %vm248, %v379, 0.0
      %430 = vadd.xlane.f32.xlu0 %v429
      %v431 = vpop.xlane.xlu0 %430
      %v432 = vsel %vm248, %v380, 0.0
      %433 = vadd.xlane.f32.xlu0 %v432
      %v434 = vpop.xlane.xlu0 %433
      %v435 = vsel %vm248, %v381, 0.0
      %436 = vadd.xlane.f32.xlu0 %v435
      %v437 = vpop.xlane.xlu0 %436
      %v438 = vsel %vm248, %v382, 0.0
      %439 = vadd.xlane.f32.xlu0 %v438
      %v440 = vpop.xlane.xlu0 %439
      %v441 = vsel %vm248, %v383, 0.0
      %442 = vadd.xlane.f32.xlu0 %v441
      %v443 = vpop.xlane.xlu0 %442
      %v444 = vsel %vm248, %v384, 0.0
      %445 = vadd.xlane.f32.xlu0 %v444
      %v446 = vpop.xlane.xlu0 %445
      %v447 = vsel %vm248, %v385, 0.0
      %448 = vadd.xlane.f32.xlu0 %v447
      %v449 = vpop.xlane.xlu0 %448
      %v450 = vsel %vm248, %v386, 0.0
      %451 = vadd.xlane.f32.xlu0 %v450
      %v452 = vpop.xlane.xlu0 %451
      %v453 = vsel %vm248, %v387, 0.0
      %454 = vadd.xlane.f32.xlu0 %v453
      %v455 = vpop.xlane.xlu0 %454
      %v456 = vsel %vm248, %v388, 0.0
      %457 = vadd.xlane.f32.xlu0 %v456
      %v458 = vpop.xlane.xlu0 %457
      %v459 = vsel %vm248, %v389, 0.0
      %460 = vadd.xlane.f32.xlu0 %v459
      %v461 = vpop.xlane.xlu0 %460
      %v462 = vsel %vm248, %v390, 0.0
      %463 = vadd.xlane.f32.xlu0 %v462
      %v464 = vpop.xlane.xlu0 %463
      %v465 = vsel %vm248, %v391, 0.0
      %466 = vadd.xlane.f32.xlu0 %v465
      %v467 = vpop.xlane.xlu0 %466
      %v468 = vsel %vm248, %v392, 0.0
      %469 = vadd.xlane.f32.xlu0 %v468
      %v470 = vpop.xlane.xlu0 %469
      %v471 = vsel %vm248, %v393, 0.0
      %472 = vadd.xlane.f32.xlu0 %v471
      %v473 = vpop.xlane.xlu0 %472
      %v474 = vsel %vm248, %v394, 0.0
      %475 = vadd.xlane.f32.xlu0 %v474
      %v476 = vpop.xlane.xlu0 %475
      %v477 = vsel %vm248, %v395, 0.0
      %478 = vadd.xlane.f32.xlu0 %v477
      %v479 = vpop.xlane.xlu0 %478
      %v480 = vsel %vm248, %v396, 0.0
      %481 = vadd.xlane.f32.xlu0 %v480
      %v482 = vpop.xlane.xlu0 %481
      %v483 = vsel %vm248, %v397, 0.0
      %484 = vadd.xlane.f32.xlu0 %v483
      %v485 = vpop.xlane.xlu0 %484
      %v486 = vsel %vm248, %v398, 0.0
      %487 = vadd.xlane.f32.xlu0 %v486
      %v488 = vpop.xlane.xlu0 %487
      %v489 = vadd.f32 %v401, 0.0
      %v490 = vadd.f32 %v404, 0.0
      %v491 = vadd.f32 %v407, 0.0
      %v492 = vadd.f32 %v410, 0.0
      %v493 = vadd.f32 %v413, 0.0
      %v494 = vadd.f32 %v416, 0.0
      %v495 = vadd.f32 %v419, 0.0
      %v496 = vadd.f32 %v422, 0.0
      %v497 = vadd.f32 %v425, 0.0
      %v498 = vadd.f32 %v428, 0.0
      %v499 = vadd.f32 %v431, 0.0
      %v500 = vadd.f32 %v434, 0.0
      %v501 = vadd.f32 %v437, 0.0
      %v502 = vadd.f32 %v440, 0.0
      %v503 = vadd.f32 %v443, 0.0
      %v504 = vadd.f32 %v446, 0.0
      %v505 = vadd.f32 %v449, 0.0
      %v506 = vadd.f32 %v452, 0.0
      %v507 = vadd.f32 %v455, 0.0
      %v508 = vadd.f32 %v458, 0.0
      %v509 = vadd.f32 %v461, 0.0
      %v510 = vadd.f32 %v464, 0.0
      %v511 = vadd.f32 %v467, 0.0
      %v512 = vadd.f32 %v470, 0.0
      %v513 = vadd.f32 %v473, 0.0
      %v514 = vadd.f32 %v476, 0.0
      %v515 = vadd.f32 %v479, 0.0
      %v516 = vadd.f32 %v482, 0.0
      %v517 = vadd.f32 %v485, 0.0
      %v518 = vadd.f32 %v488, 0.0
      %v519 = vmul.f32 %v339, 0.020408163
      %v520 = vmul.f32 %v340, 0.020408163
      %v521 = vmul.f32 %v341, 0.020408163
      %v522 = vmul.f32 %v342, 0.020408163
      %v523 = vmul.f32 %v343, 0.020408163
      %v524 = vmul.f32 %v344, 0.020408163
      %v525 = vmul.f32 %v345, 0.020408163
      %v526 = vmul.f32 %v346, 0.020408163
      %v527 = vmul.f32 %v347, 0.020408163
      %v528 = vmul.f32 %v348, 0.020408163
      %v529 = vmul.f32 %v349, 0.020408163
      %v530 = vmul.f32 %v350, 0.020408163
      %v531 = vmul.f32 %v351, 0.020408163
      %v532 = vmul.f32 %v352, 0.020408163
      %v533 = vmul.f32 %v353, 0.020408163
      %v534 = vmul.f32 %v354, 0.020408163
      %v535 = vmul.f32 %v355, 0.020408163
      %v536 = vmul.f32 %v356, 0.020408163
      %v537 = vmul.f32 %v357, 0.020408163
      %v538 = vmul.f32 %v358, 0.020408163
      %v539 = vmul.f32 %v359, 0.020408163
      %v540 = vmul.f32 %v360, 0.020408163
      %v541 = vmul.f32 %v361, 0.020408163
      %v542 = vmul.f32 %v362, 0.020408163
      %v543 = vmul.f32 %v363, 0.020408163
      %v544 = vmul.f32 %v364, 0.020408163
      %v545 = vmul.f32 %v365, 0.020408163
      %v546 = vmul.f32 %v366, 0.020408163
      %v547 = vmul.f32 %v367, 0.020408163
      %v548 = vmul.f32 %v368, 0.020408163
      %v549 = vmul.f32 %v489, 0.020408163
      %v550 = vmul.f32 %v490, 0.020408163
      %v551 = vmul.f32 %v491, 0.020408163
      %v552 = vmul.f32 %v492, 0.020408163
      %v553 = vmul.f32 %v493, 0.020408163
      %v554 = vmul.f32 %v494, 0.020408163
      %v555 = vmul.f32 %v495, 0.020408163
      %v556 = vmul.f32 %v496, 0.020408163
      %v557 = vmul.f32 %v497, 0.020408163
      %v558 = vmul.f32 %v498, 0.020408163
      %v559 = vmul.f32 %v499, 0.020408163
      %v560 = vmul.f32 %v500, 0.020408163
      %v561 = vmul.f32 %v501, 0.020408163
      %v562 = vmul.f32 %v502, 0.020408163
      %v563 = vmul.f32 %v503, 0.020408163
      %v564 = vmul.f32 %v504, 0.020408163
      %v565 = vmul.f32 %v505, 0.020408163
      %v566 = vmul.f32 %v506, 0.020408163
      %v567 = vmul.f32 %v507, 0.020408163
      %v568 = vmul.f32 %v508, 0.020408163
      %v569 = vmul.f32 %v509, 0.020408163
      %v570 = vmul.f32 %v510, 0.020408163
      %v571 = vmul.f32 %v511, 0.020408163
      %v572 = vmul.f32 %v512, 0.020408163
      %v573 = vmul.f32 %v513, 0.020408163
      %v574 = vmul.f32 %v514, 0.020408163
      %v575 = vmul.f32 %v515, 0.020408163
      %v576 = vmul.f32 %v516, 0.020408163
      %v577 = vmul.f32 %v517, 0.020408163
      %v578 = vmul.f32 %v518, 0.020408163
      %v579 = vmul.f32 %v519, %v519
      %v580 = vmul.f32 %v520, %v520
      %v581 = vmul.f32 %v521, %v521
      %v582 = vmul.f32 %v522, %v522
      %v583 = vmul.f32 %v523, %v523
      %v584 = vmul.f32 %v524, %v524
      %v585 = vmul.f32 %v525, %v525
      %v586 = vmul.f32 %v526, %v526
      %v587 = vmul.f32 %v527, %v527
      %v588 = vmul.f32 %v528, %v528
      %v589 = vmul.f32 %v529, %v529
      %v590 = vmul.f32 %v530, %v530
      %v591 = vmul.f32 %v531, %v531
      %v592 = vmul.f32 %v532, %v532
      %v593 = vmul.f32 %v533, %v533
      %v594 = vmul.f32 %v534, %v534
      %v595 = vmul.f32 %v535, %v535
      %v596 = vmul.f32 %v536, %v536
      %v597 = vmul.f32 %v537, %v537
      %v598 = vmul.f32 %v538, %v538
      %v599 = vmul.f32 %v539, %v539
      %v600 = vmul.f32 %v540, %v540
      %v601 = vmul.f32 %v541, %v541
      %v602 = vmul.f32 %v542, %v542
      %v603 = vmul.f32 %v543, %v543
      %v604 = vmul.f32 %v544, %v544
      %v605 = vmul.f32 %v545, %v545
      %v606 = vmul.f32 %v546, %v546
      %v607 = vmul.f32 %v547, %v547
      %v608 = vmul.f32 %v548, %v548
      %v609 = vsub.f32 %v549, %v579
      %v610 = vsub.f32 %v550, %v580
      %v611 = vsub.f32 %v551, %v581
      %v612 = vsub.f32 %v552, %v582
      %v613 = vsub.f32 %v553, %v583
      %v614 = vsub.f32 %v554, %v584
      %v615 = vsub.f32 %v555, %v585
      %v616 = vsub.f32 %v556, %v586
      %v617 = vsub.f32 %v557, %v587
      %v618 = vsub.f32 %v558, %v588
      %v619 = vsub.f32 %v559, %v589
      %v620 = vsub.f32 %v560, %v590
      %v621 = vsub.f32 %v561, %v591
      %v622 = vsub.f32 %v562, %v592
      %v623 = vsub.f32 %v563, %v593
      %v624 = vsub.f32 %v564, %v594
      %v625 = vsub.f32 %v565, %v595
      %v626 = vsub.f32 %v566, %v596
      %v627 = vsub.f32 %v567, %v597
      %v628 = vsub.f32 %v568, %v598
      %v629 = vsub.f32 %v569, %v599
      %v630 = vsub.f32 %v570, %v600
      %v631 = vsub.f32 %v571, %v601
      %v632 = vsub.f32 %v572, %v602
      %v633 = vsub.f32 %v573, %v603
      %v634 = vsub.f32 %v574, %v604
      %v635 = vsub.f32 %v575, %v605
      %v636 = vsub.f32 %v576, %v606
      %v637 = vsub.f32 %v577, %v607
      %v638 = vsub.f32 %v578, %v608
      %v639 = vadd.f32 %v609, 0.001
      %v640 = vadd.f32 %v610, 0.001
      %v641 = vadd.f32 %v611, 0.001
      %v642 = vadd.f32 %v612, 0.001
      %v643 = vadd.f32 %v613, 0.001
      %v644 = vadd.f32 %v614, 0.001
      %v645 = vadd.f32 %v615, 0.001
      %v646 = vadd.f32 %v616, 0.001
      %v647 = vadd.f32 %v617, 0.001
      %v648 = vadd.f32 %v618, 0.001
      %v649 = vadd.f32 %v619, 0.001
      %v650 = vadd.f32 %v620, 0.001
      %v651 = vadd.f32 %v621, 0.001
      %v652 = vadd.f32 %v622, 0.001
      %v653 = vadd.f32 %v623, 0.001
      %v654 = vadd.f32 %v624, 0.001
      %v655 = vadd.f32 %v625, 0.001
      %v656 = vadd.f32 %v626, 0.001
      %v657 = vadd.f32 %v627, 0.001
      %v658 = vadd.f32 %v628, 0.001
      %v659 = vadd.f32 %v629, 0.001
      %v660 = vadd.f32 %v630, 0.001
      %v661 = vadd.f32 %v631, 0.001
      %v662 = vadd.f32 %v632, 0.001
      %v663 = vadd.f32 %v633, 0.001
      %v664 = vadd.f32 %v634, 0.001
      %v665 = vadd.f32 %v635, 0.001
      %v666 = vadd.f32 %v636, 0.001
      %v667 = vadd.f32 %v637, 0.001
      %v668 = vadd.f32 %v638, 0.001
      %v669 = vrsqrt.pop %v639
      %v670 = vrsqrt.pop %v640
      %v671 = vrsqrt.pop %v641
      %v672 = vrsqrt.pop %v642
      %v673 = vrsqrt.pop %v643
      %v674 = vrsqrt.pop %v644
      %v675 = vrsqrt.pop %v645
      %v676 = vrsqrt.pop %v646
      %v677 = vrsqrt.pop %v647
      %v678 = vrsqrt.pop %v648
      %v679 = vrsqrt.pop %v649
      %v680 = vrsqrt.pop %v650
      %v681 = vrsqrt.pop %v651
      %v682 = vrsqrt.pop %v652
      %v683 = vrsqrt.pop %v653
      %v684 = vrsqrt.pop %v654
      %v685 = vrsqrt.pop %v655
      %v686 = vrsqrt.pop %v656
      %v687 = vrsqrt.pop %v657
      %v688 = vrsqrt.pop %v658
      %v689 = vrsqrt.pop %v659
      %v690 = vrsqrt.pop %v660
      %v691 = vrsqrt.pop %v661
      %v692 = vrsqrt.pop %v662
      %v693 = vrsqrt.pop %v663
      %v694 = vrsqrt.pop %v664
      %v695 = vrsqrt.pop %v665
      %v696 = vrsqrt.pop %v666
      %v697 = vrsqrt.pop %v667
      %v698 = vrsqrt.pop %v668
      %v699 = vld [vmem:[%s204] sm:$0xff]
      %v700 = vld [vmem:[%s204 + $0x8] sm:$0xff]
      %v701 = vld [vmem:[%s204 + $0x10] sm:$0xff]
      %v702 = vld [vmem:[%s204 + $0x18] sm:$0xff]
      %v703 = vld [vmem:[%s204 + $0x20] sm:$0xff]
      %v704 = vld [vmem:[%s204 + $0x28] sm:$0xff]
      %v705 = vld [vmem:[%s204 + $0x30] sm:$0xff]
      %v706 = vld [vmem:[%s204 + $0x38] sm:$0xff]
      %v707 = vld [vmem:[%s204 + $0x40] sm:$0xff]
      %v708 = vld [vmem:[%s204 + $0x48] sm:$0xff]
      %v709 = vld [vmem:[%s204 + $0x50] sm:$0xff]
      %v710 = vld [vmem:[%s204 + $0x58] sm:$0xff]
      %v711 = vld [vmem:[%s204 + $0x60] sm:$0xff]
      %v712 = vld [vmem:[%s204 + $0x68] sm:$0xff]
      %v713 = vld [vmem:[%s204 + $0x70] sm:$0xff]
      %v714 = vld [vmem:[%s204 + $0x78] sm:$0xff]
      %v715 = vld [vmem:[%s204 + $0x80] sm:$0xff]
      %v716 = vld [vmem:[%s204 + $0x88] sm:$0xff]
      %v717 = vld [vmem:[%s204 + $0x90] sm:$0xff]
      %v718 = vld [vmem:[%s204 + $0x98] sm:$0xff]
      %v719 = vld [vmem:[%s204 + $0xa0] sm:$0xff]
      %v720 = vld [vmem:[%s204 + $0xa8] sm:$0xff]
      %v721 = vld [vmem:[%s204 + $0xb0] sm:$0xff]
      %v722 = vld [vmem:[%s204 + $0xb8] sm:$0xff]
      %v723 = vld [vmem:[%s204 + $0xc0] sm:$0xff]
      %v724 = vld [vmem:[%s204 + $0xc8] sm:$0xff]
      %v725 = vld [vmem:[%s204 + $0xd0] sm:$0xff]
      %v726 = vld [vmem:[%s204 + $0xd8] sm:$0xff]
      %v727 = vld [vmem:[%s204 + $0xe0] sm:$0xff]
      %v728 = vld [vmem:[%s204 + $0xe8] sm:$0xff]
      %v729 = vmul.f32 %v669, %v699
      %v730 = vmul.f32 %v670, %v700
      %v731 = vmul.f32 %v671, %v701
      %v732 = vmul.f32 %v672, %v702
      %v733 = vmul.f32 %v673, %v703
      %v734 = vmul.f32 %v674, %v704
      %v735 = vmul.f32 %v675, %v705
      %v736 = vmul.f32 %v676, %v706
      %v737 = vmul.f32 %v677, %v707
      %v738 = vmul.f32 %v678, %v708
      %v739 = vmul.f32 %v679, %v709
      %v740 = vmul.f32 %v680, %v710
      %v741 = vmul.f32 %v681, %v711
      %v742 = vmul.f32 %v682, %v712
      %v743 = vmul.f32 %v683, %v713
      %v744 = vmul.f32 %v684, %v714
      %v745 = vmul.f32 %v685, %v715
      %v746 = vmul.f32 %v686, %v716
      %v747 = vmul.f32 %v687, %v717
      %v748 = vmul.f32 %v688, %v718
      %v749 = vmul.f32 %v689, %v719
      %v750 = vmul.f32 %v690, %v720
      %v751 = vmul.f32 %v691, %v721
      %v752 = vmul.f32 %v692, %v722
      %v753 = vmul.f32 %v693, %v723
      %v754 = vmul.f32 %v694, %v724
      %v755 = vmul.f32 %v695, %v725
      %v756 = vmul.f32 %v696, %v726
      %v757 = vmul.f32 %v697, %v727
      %v758 = vmul.f32 %v698, %v728
      %v759 = vld [vmem:[%s210] sm:$0xff]
      %v760 = vld [vmem:[%s210 + $0x8] sm:$0xff]
      %v761 = vld [vmem:[%s210 + $0x10] sm:$0xff]
      %v762 = vld [vmem:[%s210 + $0x18] sm:$0xff]
      %v763 = vld [vmem:[%s210 + $0x20] sm:$0xff]
      %v764 = vld [vmem:[%s210 + $0x28] sm:$0xff]
      %v765 = vld [vmem:[%s210 + $0x30] sm:$0xff]
      %v766 = vld [vmem:[%s210 + $0x38] sm:$0xff]
      %v767 = vld [vmem:[%s210 + $0x40] sm:$0xff]
      %v768 = vld [vmem:[%s210 + $0x48] sm:$0xff]
      %v769 = vld [vmem:[%s210 + $0x50] sm:$0xff]
      %v770 = vld [vmem:[%s210 + $0x58] sm:$0xff]
      %v771 = vld [vmem:[%s210 + $0x60] sm:$0xff]
      %v772 = vld [vmem:[%s210 + $0x68] sm:$0xff]
      %v773 = vld [vmem:[%s210 + $0x70] sm:$0xff]
      %v774 = vld [vmem:[%s210 + $0x78] sm:$0xff]
      %v775 = vld [vmem:[%s210 + $0x80] sm:$0xff]
      %v776 = vld [vmem:[%s210 + $0x88] sm:$0xff]
      %v777 = vld [vmem:[%s210 + $0x90] sm:$0xff]
      %v778 = vld [vmem:[%s210 + $0x98] sm:$0xff]
      %v779 = vld [vmem:[%s210 + $0xa0] sm:$0xff]
      %v780 = vld [vmem:[%s210 + $0xa8] sm:$0xff]
      %v781 = vld [vmem:[%s210 + $0xb0] sm:$0xff]
      %v782 = vld [vmem:[%s210 + $0xb8] sm:$0xff]
      %v783 = vld [vmem:[%s210 + $0xc0] sm:$0xff]
      %v784 = vld [vmem:[%s210 + $0xc8] sm:$0xff]
      %v785 = vld [vmem:[%s210 + $0xd0] sm:$0xff]
      %v786 = vld [vmem:[%s210 + $0xd8] sm:$0xff]
      %v787 = vld [vmem:[%s210 + $0xe0] sm:$0xff]
      %v788 = vld [vmem:[%s210 + $0xe8] sm:$0xff]
      %v789 = vmul.f32 %v519, %v729
      %v790 = vmul.f32 %v520, %v730
      %v791 = vmul.f32 %v521, %v731
      %v792 = vmul.f32 %v522, %v732
      %v793 = vmul.f32 %v523, %v733
      %v794 = vmul.f32 %v524, %v734
      %v795 = vmul.f32 %v525, %v735
      %v796 = vmul.f32 %v526, %v736
      %v797 = vmul.f32 %v527, %v737
      %v798 = vmul.f32 %v528, %v738
      %v799 = vmul.f32 %v529, %v739
      %v800 = vmul.f32 %v530, %v740
      %v801 = vmul.f32 %v531, %v741
      %v802 = vmul.f32 %v532, %v742
      %v803 = vmul.f32 %v533, %v743
      %v804 = vmul.f32 %v534, %v744
      %v805 = vmul.f32 %v535, %v745
      %v806 = vmul.f32 %v536, %v746
      %v807 = vmul.f32 %v537, %v747
      %v808 = vmul.f32 %v538, %v748
      %v809 = vmul.f32 %v539, %v749
      %v810 = vmul.f32 %v540, %v750
      %v811 = vmul.f32 %v541, %v751
      %v812 = vmul.f32 %v542, %v752
      %v813 = vmul.f32 %v543, %v753
      %v814 = vmul.f32 %v544, %v754
      %v815 = vmul.f32 %v545, %v755
      %v816 = vmul.f32 %v546, %v756
      %v817 = vmul.f32 %v547, %v757
      %v818 = vmul.f32 %v548, %v758
      %v819 = vsub.f32 %v759, %v789
      %v820 = vsub.f32 %v760, %v790
      %v821 = vsub.f32 %v761, %v791
      %v822 = vsub.f32 %v762, %v792
      %v823 = vsub.f32 %v763, %v793
      %v824 = vsub.f32 %v764, %v794
      %v825 = vsub.f32 %v765, %v795
      %v826 = vsub.f32 %v766, %v796
      %v827 = vsub.f32 %v767, %v797
      %v828 = vsub.f32 %v768, %v798
      %v829 = vsub.f32 %v769, %v799
      %v830 = vsub.f32 %v770, %v800
      %v831 = vsub.f32 %v771, %v801
      %v832 = vsub.f32 %v772, %v802
      %v833 = vsub.f32 %v773, %v803
      %v834 = vsub.f32 %v774, %v804
      %v835 = vsub.f32 %v775, %v805
      %v836 = vsub.f32 %v776, %v806
      %v837 = vsub.f32 %v777, %v807
      %v838 = vsub.f32 %v778, %v808
      %v839 = vsub.f32 %v779, %v809
      %v840 = vsub.f32 %v780, %v810
      %v841 = vsub.f32 %v781, %v811
      %v842 = vsub.f32 %v782, %v812
      %v843 = vsub.f32 %v783, %v813
      %v844 = vsub.f32 %v784, %v814
      %v845 = vsub.f32 %v785, %v815
      %v846 = vsub.f32 %v786, %v816
      %v847 = vsub.f32 %v787, %v817
      %v848 = vsub.f32 %v788, %v818
      %850 = vset.pattern.permute.xlu0 0
      %851 = vperm.xlu0 %850, %v729
      %v852 = vpop.permute.xlu0 %851
      %855 = vset.pattern.permute.xlu0 0
      %856 = vperm.xlu0 %855, %v730
      %v857 = vpop.permute.xlu0 %856
      %860 = vset.pattern.permute.xlu0 0
      %861 = vperm.xlu0 %860, %v731
      %v862 = vpop.permute.xlu0 %861
      %865 = vset.pattern.permute.xlu0 0
      %866 = vperm.xlu0 %865, %v732
      %v867 = vpop.permute.xlu0 %866
      %870 = vset.pattern.permute.xlu0 0
      %871 = vperm.xlu0 %870, %v733
      %v872 = vpop.permute.xlu0 %871
      %875 = vset.pattern.permute.xlu0 0
      %876 = vperm.xlu0 %875, %v734
      %v877 = vpop.permute.xlu0 %876
      %880 = vset.pattern.permute.xlu0 0
      %881 = vperm.xlu0 %880, %v735
      %v882 = vpop.permute.xlu0 %881
      %885 = vset.pattern.permute.xlu0 0
      %886 = vperm.xlu0 %885, %v736
      %v887 = vpop.permute.xlu0 %886
      %890 = vset.pattern.permute.xlu0 0
      %891 = vperm.xlu0 %890, %v737
      %v892 = vpop.permute.xlu0 %891
      %895 = vset.pattern.permute.xlu0 0
      %896 = vperm.xlu0 %895, %v738
      %v897 = vpop.permute.xlu0 %896
      %900 = vset.pattern.permute.xlu0 0
      %901 = vperm.xlu0 %900, %v739
      %v902 = vpop.permute.xlu0 %901
      %905 = vset.pattern.permute.xlu0 0
      %906 = vperm.xlu0 %905, %v740
      %v907 = vpop.permute.xlu0 %906
      %910 = vset.pattern.permute.xlu0 0
      %911 = vperm.xlu0 %910, %v741
      %v912 = vpop.permute.xlu0 %911
      %915 = vset.pattern.permute.xlu0 0
      %916 = vperm.xlu0 %915, %v742
      %v917 = vpop.permute.xlu0 %916
      %920 = vset.pattern.permute.xlu0 0
      %921 = vperm.xlu0 %920, %v743
      %v922 = vpop.permute.xlu0 %921
      %925 = vset.pattern.permute.xlu0 0
      %926 = vperm.xlu0 %925, %v744
      %v927 = vpop.permute.xlu0 %926
      %930 = vset.pattern.permute.xlu0 0
      %931 = vperm.xlu0 %930, %v745
      %v932 = vpop.permute.xlu0 %931
      %935 = vset.pattern.permute.xlu0 0
      %936 = vperm.xlu0 %935, %v746
      %v937 = vpop.permute.xlu0 %936
      %940 = vset.pattern.permute.xlu0 0
      %941 = vperm.xlu0 %940, %v747
      %v942 = vpop.permute.xlu0 %941
      %945 = vset.pattern.permute.xlu0 0
      %946 = vperm.xlu0 %945, %v748
      %v947 = vpop.permute.xlu0 %946
      %950 = vset.pattern.permute.xlu0 0
      %951 = vperm.xlu0 %950, %v749
      %v952 = vpop.permute.xlu0 %951
      %955 = vset.pattern.permute.xlu0 0
      %956 = vperm.xlu0 %955, %v750
      %v957 = vpop.permute.xlu0 %956
      %960 = vset.pattern.permute.xlu0 0
      %961 = vperm.xlu0 %960, %v751
      %v962 = vpop.permute.xlu0 %961
      %965 = vset.pattern.permute.xlu0 0
      %966 = vperm.xlu0 %965, %v752
      %v967 = vpop.permute.xlu0 %966
      %970 = vset.pattern.permute.xlu0 0
      %971 = vperm.xlu0 %970, %v753
      %v972 = vpop.permute.xlu0 %971
      %975 = vset.pattern.permute.xlu0 0
      %976 = vperm.xlu0 %975, %v754
      %v977 = vpop.permute.xlu0 %976
      %980 = vset.pattern.permute.xlu0 0
      %981 = vperm.xlu0 %980, %v755
      %v982 = vpop.permute.xlu0 %981
      %985 = vset.pattern.permute.xlu0 0
      %986 = vperm.xlu0 %985, %v756
      %v987 = vpop.permute.xlu0 %986
      %990 = vset.pattern.permute.xlu0 0
      %991 = vperm.xlu0 %990, %v757
      %v992 = vpop.permute.xlu0 %991
      %995 = vset.pattern.permute.xlu0 0
      %996 = vperm.xlu0 %995, %v758
      %v997 = vpop.permute.xlu0 %996
      %v999 = vmul.f32 %v218, %v852
      %v1000 = vmul.f32 %v219, %v857
      %v1001 = vmul.f32 %v220, %v862
      %v1002 = vmul.f32 %v221, %v867
      %v1003 = vmul.f32 %v222, %v872
      %v1004 = vmul.f32 %v223, %v877
      %v1005 = vmul.f32 %v224, %v882
      %v1006 = vmul.f32 %v225, %v887
      %v1007 = vmul.f32 %v226, %v892
      %v1008 = vmul.f32 %v227, %v897
      %v1009 = vmul.f32 %v228, %v902
      %v1010 = vmul.f32 %v229, %v907
      %v1011 = vmul.f32 %v230, %v912
      %v1012 = vmul.f32 %v231, %v917
      %v1013 = vmul.f32 %v232, %v922
      %v1014 = vmul.f32 %v233, %v927
      %v1015 = vmul.f32 %v234, %v932
      %v1016 = vmul.f32 %v235, %v937
      %v1017 = vmul.f32 %v236, %v942
      %v1018 = vmul.f32 %v237, %v947
      %v1019 = vmul.f32 %v238, %v952
      %v1020 = vmul.f32 %v239, %v957
      %v1021 = vmul.f32 %v240, %v962
      %v1022 = vmul.f32 %v241, %v967
      %v1023 = vmul.f32 %v242, %v972
      %v1024 = vmul.f32 %v243, %v977
      %v1025 = vmul.f32 %v244, %v982
      %v1026 = vmul.f32 %v245, %v987
      %v1027 = vmul.f32 %v246, %v992
      %v1028 = vmul.f32 %v247, %v997
      %1030 = vset.pattern.permute.xlu0 0
      %1031 = vperm.xlu0 %1030, %v819
      %v1032 = vpop.permute.xlu0 %1031
      %1035 = vset.pattern.permute.xlu0 0
      %1036 = vperm.xlu0 %1035, %v820
      %v1037 = vpop.permute.xlu0 %1036
      %1040 = vset.pattern.permute.xlu0 0
      %1041 = vperm.xlu0 %1040, %v821
      %v1042 = vpop.permute.xlu0 %1041
      %1045 = vset.pattern.permute.xlu0 0
      %1046 = vperm.xlu0 %1045, %v822
      %v1047 = vpop.permute.xlu0 %1046
      %1050 = vset.pattern.permute.xlu0 0
      %1051 = vperm.xlu0 %1050, %v823
      %v1052 = vpop.permute.xlu0 %1051
      %1055 = vset.pattern.permute.xlu0 0
      %1056 = vperm.xlu0 %1055, %v824
      %v1057 = vpop.permute.xlu0 %1056
      %1060 = vset.pattern.permute.xlu0 0
      %1061 = vperm.xlu0 %1060, %v825
      %v1062 = vpop.permute.xlu0 %1061
      %1065 = vset.pattern.permute.xlu0 0
      %1066 = vperm.xlu0 %1065, %v826
      %v1067 = vpop.permute.xlu0 %1066
      %1070 = vset.pattern.permute.xlu0 0
      %1071 = vperm.xlu0 %1070, %v827
      %v1072 = vpop.permute.xlu0 %1071
      %1075 = vset.pattern.permute.xlu0 0
      %1076 = vperm.xlu0 %1075, %v828
      %v1077 = vpop.permute.xlu0 %1076
      %1080 = vset.pattern.permute.xlu0 0
      %1081 = vperm.xlu0 %1080, %v829
      %v1082 = vpop.permute.xlu0 %1081
      %1085 = vset.pattern.permute.xlu0 0
      %1086 = vperm.xlu0 %1085, %v830
      %v1087 = vpop.permute.xlu0 %1086
      %1090 = vset.pattern.permute.xlu0 0
      %1091 = vperm.xlu0 %1090, %v831
      %v1092 = vpop.permute.xlu0 %1091
      %1095 = vset.pattern.permute.xlu0 0
      %1096 = vperm.xlu0 %1095, %v832
      %v1097 = vpop.permute.xlu0 %1096
      %1100 = vset.pattern.permute.xlu0 0
      %1101 = vperm.xlu0 %1100, %v833
      %v1102 = vpop.permute.xlu0 %1101
      %1105 = vset.pattern.permute.xlu0 0
      %1106 = vperm.xlu0 %1105, %v834
      %v1107 = vpop.permute.xlu0 %1106
      %1110 = vset.pattern.permute.xlu0 0
      %1111 = vperm.xlu0 %1110, %v835
      %v1112 = vpop.permute.xlu0 %1111
      %1115 = vset.pattern.permute.xlu0 0
      %1116 = vperm.xlu0 %1115, %v836
      %v1117 = vpop.permute.xlu0 %1116
      %1120 = vset.pattern.permute.xlu0 0
      %1121 = vperm.xlu0 %1120, %v837
      %v1122 = vpop.permute.xlu0 %1121
      %1125 = vset.pattern.permute.xlu0 0
      %1126 = vperm.xlu0 %1125, %v838
      %v1127 = vpop.permute.xlu0 %1126
      %1130 = vset.pattern.permute.xlu0 0
      %1131 = vperm.xlu0 %1130, %v839
      %v1132 = vpop.permute.xlu0 %1131
      %1135 = vset.pattern.permute.xlu0 0
      %1136 = vperm.xlu0 %1135, %v840
      %v1137 = vpop.permute.xlu0 %1136
      %1140 = vset.pattern.permute.xlu0 0
      %1141 = vperm.xlu0 %1140, %v841
      %v1142 = vpop.permute.xlu0 %1141
      %1145 = vset.pattern.permute.xlu0 0
      %1146 = vperm.xlu0 %1145, %v842
      %v1147 = vpop.permute.xlu0 %1146
      %1150 = vset.pattern.permute.xlu0 0
      %1151 = vperm.xlu0 %1150, %v843
      %v1152 = vpop.permute.xlu0 %1151
      %1155 = vset.pattern.permute.xlu0 0
      %1156 = vperm.xlu0 %1155, %v844
      %v1157 = vpop.permute.xlu0 %1156
      %1160 = vset.pattern.permute.xlu0 0
      %1161 = vperm.xlu0 %1160, %v845
      %v1162 = vpop.permute.xlu0 %1161
      %1165 = vset.pattern.permute.xlu0 0
      %1166 = vperm.xlu0 %1165, %v846
      %v1167 = vpop.permute.xlu0 %1166
      %1170 = vset.pattern.permute.xlu0 0
      %1171 = vperm.xlu0 %1170, %v847
      %v1172 = vpop.permute.xlu0 %1171
      %1175 = vset.pattern.permute.xlu0 0
      %1176 = vperm.xlu0 %1175, %v848
      %v1177 = vpop.permute.xlu0 %1176
      %v1179 = vadd.f32 %v999, %v1032
      %v1180 = vadd.f32 %v1000, %v1037
      %v1181 = vadd.f32 %v1001, %v1042
      %v1182 = vadd.f32 %v1002, %v1047
      %v1183 = vadd.f32 %v1003, %v1052
      %v1184 = vadd.f32 %v1004, %v1057
      %v1185 = vadd.f32 %v1005, %v1062
      %v1186 = vadd.f32 %v1006, %v1067
      %v1187 = vadd.f32 %v1007, %v1072
      %v1188 = vadd.f32 %v1008, %v1077
      %v1189 = vadd.f32 %v1009, %v1082
      %v1190 = vadd.f32 %v1010, %v1087
      %v1191 = vadd.f32 %v1011, %v1092
      %v1192 = vadd.f32 %v1012, %v1097
      %v1193 = vadd.f32 %v1013, %v1102
      %v1194 = vadd.f32 %v1014, %v1107
      %v1195 = vadd.f32 %v1015, %v1112
      %v1196 = vadd.f32 %v1016, %v1117
      %v1197 = vadd.f32 %v1017, %v1122
      %v1198 = vadd.f32 %v1018, %v1127
      %v1199 = vadd.f32 %v1019, %v1132
      %v1200 = vadd.f32 %v1020, %v1137
      %v1201 = vadd.f32 %v1021, %v1142
      %v1202 = vadd.f32 %v1022, %v1147
      %v1203 = vadd.f32 %v1023, %v1152
      %v1204 = vadd.f32 %v1024, %v1157
      %v1205 = vadd.f32 %v1025, %v1162
      %v1206 = vadd.f32 %v1026, %v1167
      %v1207 = vadd.f32 %v1027, %v1172
      %v1208 = vadd.f32 %v1028, %v1177
      %1209 = vst.msk [vmem:[%s216] sm:$0xff] %vm248, %v1179
      %1210 = vst.msk [vmem:[%s216 + $0x8] sm:$0xff] %vm248, %v1180
      %1211 = vst.msk [vmem:[%s216 + $0x10] sm:$0xff] %vm248, %v1181
      %1212 = vst.msk [vmem:[%s216 + $0x18] sm:$0xff] %vm248, %v1182
      %1213 = vst.msk [vmem:[%s216 + $0x20] sm:$0xff] %vm248, %v1183
      %1214 = vst.msk [vmem:[%s216 + $0x28] sm:$0xff] %vm248, %v1184
      %1215 = vst.msk [vmem:[%s216 + $0x30] sm:$0xff] %vm248, %v1185
      %1216 = vst.msk [vmem:[%s216 + $0x38] sm:$0xff] %vm248, %v1186
      %1217 = vst.msk [vmem:[%s216 + $0x40] sm:$0xff] %vm248, %v1187
      %1218 = vst.msk [vmem:[%s216 + $0x48] sm:$0xff] %vm248, %v1188
      %1219 = vst.msk [vmem:[%s216 + $0x50] sm:$0xff] %vm248, %v1189
      %1220 = vst.msk [vmem:[%s216 + $0x58] sm:$0xff] %vm248, %v1190
      %1221 = vst.msk [vmem:[%s216 + $0x60] sm:$0xff] %vm248, %v1191
      %1222 = vst.msk [vmem:[%s216 + $0x68] sm:$0xff] %vm248, %v1192
      %1223 = vst.msk [vmem:[%s216 + $0x70] sm:$0xff] %vm248, %v1193
      %1224 = vst.msk [vmem:[%s216 + $0x78] sm:$0xff] %vm248, %v1194
      %1225 = vst.msk [vmem:[%s216 + $0x80] sm:$0xff] %vm248, %v1195
      %1226 = vst.msk [vmem:[%s216 + $0x88] sm:$0xff] %vm248, %v1196
      %1227 = vst.msk [vmem:[%s216 + $0x90] sm:$0xff] %vm248, %v1197
      %1228 = vst.msk [vmem:[%s216 + $0x98] sm:$0xff] %vm248, %v1198
      %1229 = vst.msk [vmem:[%s216 + $0xa0] sm:$0xff] %vm248, %v1199
      %1230 = vst.msk [vmem:[%s216 + $0xa8] sm:$0xff] %vm248, %v1200
      %1231 = vst.msk [vmem:[%s216 + $0xb0] sm:$0xff] %vm248, %v1201
      %1232 = vst.msk [vmem:[%s216 + $0xb8] sm:$0xff] %vm248, %v1202
      %1233 = vst.msk [vmem:[%s216 + $0xc0] sm:$0xff] %vm248, %v1203
      %1234 = vst.msk [vmem:[%s216 + $0xc8] sm:$0xff] %vm248, %v1204
      %1235 = vst.msk [vmem:[%s216 + $0xd0] sm:$0xff] %vm248, %v1205
      %1236 = vst.msk [vmem:[%s216 + $0xd8] sm:$0xff] %vm248, %v1206
      %1237 = vst.msk [vmem:[%s216 + $0xe0] sm:$0xff] %vm248, %v1207
      %1238 = vst.msk [vmem:[%s216 + $0xe8] sm:$0xff] %vm248, %v1208
      %s1239 = smul.u32 30, %s14
      %p1240 = scmp.lt.s32.totalorder %s1239, 119
      %s1241 = scalar_select %p1240, %s1239, 119
      %s1242 = smul.addr %s1241, 8
      %s1243 = scalar_lea.vmem %s3, %s1242
      // Predicated region
      $region33: #{tpu_custom_call.1} parent=31 // pred_check
        %p1244 = pneg %p110
      $region34: #{tpu_custom_call.1} parent=31 // pred_check_branch
        %1246 = sbr.rel (%p1244) target = $region36
      $region35: #{tpu_custom_call.1} parent=31 // pred_region
        %s1247 = smul.u32 30, %s14
      $region36: #{tpu_custom_call.1} parent=31 // pred_fallthru
        _
    $region32: #{tpu_custom_call.1} parent=5 // pred_fallthru
      _
    %p1248 = scmp.le.s32.totalorder 2, %s9
    // Predicated region
    $region37: #{tpu_custom_call.1} parent=5 // pred_check
      %p1249 = pneg %p1248
    $region38: #{tpu_custom_call.1} parent=5 // pred_check_branch
      %1251 = sbr.rel (%p1249) target = $region40
    $region39: #{tpu_custom_call.1} parent=5 // pred_region
      %s1252 = ssub.s32 %s9, 2
      // Predicated region
      $region41: #{tpu_custom_call.1} parent=39 // pred_check
        %p1253 = pneg %p116
      $region42: #{tpu_custom_call.1} parent=39 // pred_check_branch
        %1255 = sbr.rel (%p1253) target = $region44
      $region43: #{tpu_custom_call.1} parent=39 // pred_region
        %s1256 = smul.u32 30, %s15
        %p1257 = scmp.lt.s32.totalorder %s1256, 119
        %s1258 = scalar_select %p1257, %s1256, 119
        %s1259 = smul.addr %s1258, 8
        %s1260 = scalar_lea.vmem %s3, %s1259
      $region44: #{tpu_custom_call.1} parent=39 // pred_fallthru
        _
    $region40: #{tpu_custom_call.1} parent=5 // pred_fallthru
      _
  $region6: #{tpu_custom_call.1} parent=0 // loop_footer
    %s13 = sadd.s32 1, %s9
  $region7: #{tpu_custom_call.1} parent=0 // loop_footer_branch
    %8 = sbr.rel target = $region3
  $region8: #{tpu_custom_call.1} parent=0 // loop_exit
    _

</llo_original>
